<compile_context>
chip_gen: v7x
topology: tpu7x:2x2x1
jax: 0.10.0
libtpu: 0.0.40
codegen_flags: <defaults>
</compile_context>

<pallas_src>
import jax
import jax.numpy as jnp
from jax.experimental import pallas as pl
from jax.experimental.pallas import tpu as pltpu


def _round_up(v, m):
    return ((v + m - 1) // m) * m


def _branching_kernel(x_ref, w1_ref, b1_ref, w2_ref, b2_ref, o_ref):
    """Fully fused: both layers of all N branches in two MXU matmuls.

    x_ref:   (bm, H)              shared input tile
    w1_ref:  (H, NH_pad)          layer-1 weights, branch-major along lanes
    b1_ref:  (1, NH_pad)          f32
    w2_ref:  (NH_pad, NO_pad)     block-diagonal layer-2 weights
    b2_ref:  (1, NO_pad)          f32
    o_ref:   (bm, NO_pad)         lane-dense fused output
    """
    x = x_ref[...]
    # Layer 1 for ALL branches: one lane-dense MXU matmul, f32 accumulation.
    h = jnp.dot(x, w1_ref[...], preferred_element_type=jnp.float32) + b1_ref[...]
    h = jnp.maximum(h, 0.0)  # ReLU in f32
    # Layer 2 for ALL branches: one block-diagonal MXU matmul.
    y = (
        jnp.dot(h.astype(w2_ref.dtype), w2_ref[...],
                preferred_element_type=jnp.float32)
        + b2_ref[...]
    )
    o_ref[...] = y.astype(o_ref.dtype)


def pack_branching_params(w1, b1, w2, b2, *, compute_dtype=jnp.float32,
                          lane=128):
    """One-time parameter packing (hoisted out of the forward path).

    Args:
      w1: (N, H, HID), b1: (N, 1, HID)
      w2: (N, HID, O), b2: (N, 1, O)
      compute_dtype: dtype for the packed weights / input casts.  Use
        jnp.bfloat16 at real model sizes (biases & accumulation stay f32).
    Returns a dict of packed, padded, device-ready arrays plus metadata.
    """
    N, H, HID = w1.shape
    O = w2.shape[-1]
    NH, NO = N * HID, N * O
    NH_pad, NO_pad = _round_up(NH, lane), _round_up(NO, lane)

    # Layer-1 weights/biases branch-major along the lane (last) dim.
    w1p = jnp.transpose(w1, (1, 0, 2)).reshape(H, NH)
    w1p = jnp.pad(w1p, ((0, 0), (0, NH_pad - NH))).astype(compute_dtype)
    b1p = jnp.pad(b1.reshape(1, NH), ((0, 0), (0, NO_pad * 0 + NH_pad - NH)))
    b1p = b1p.astype(jnp.float32)

    # Layer-2: block-diagonal (NH, NO) so all branches fuse into one matmul.
    eye = jnp.eye(N, dtype=w2.dtype)
    w2bd = jnp.einsum("aio,ab->aibo", w2, eye).reshape(NH, NO)
    w2bd = jnp.pad(w2bd, ((0, NH_pad - NH), (0, NO_pad - NO)))
    w2bd = w2bd.astype(compute_dtype)
    b2p = jnp.pad(b2.reshape(1, NO), ((0, 0), (0, NO_pad - NO)))
    b2p = b2p.astype(jnp.float32)

    return dict(w1p=w1p, b1p=b1p, w2bd=w2bd, b2p=b2p,
                N=N, H=H, HID=HID, O=O, NO=NO,
                compute_dtype=compute_dtype)


def branching_forward(x, packed):
    """Run all branches over x in one Pallas call.

    Args:
      x: (B, H) float32
      packed: output of pack_branching_params (packed once at init).
    Returns:
      list of N arrays, each (B, O) f32 -- matching the PyTorch list output.
    """
    B, H = x.shape
    assert H == packed["H"]
    N, O, NO = packed["N"], packed["O"], packed["NO"]
    w1p, b1p, w2bd, b2p = (packed["w1p"], packed["b1p"],
                           packed["w2bd"], packed["b2p"])
    NH_pad = w1p.shape[1]
    NO_pad = w2bd.shape[1]

    # Batch padding/tiling: sublane-aligned, tiled to <=128 rows per step so
    # large batches get a "parallel" grid axis (megacore on v7x).
    B_pad = _round_up(B, 8)
    bm = min(B_pad, 128)
    B_pad = _round_up(B_pad, bm)
    x_p = x.astype(packed["compute_dtype"])
    if B_pad != B:
        x_p = jnp.pad(x_p, ((0, B_pad - B), (0, 0)))

    grid = (B_pad // bm,)
    vmem = pltpu.MemorySpace.VMEM

    y = pl.pallas_call(
        _branching_kernel,
        out_shape=jax.ShapeDtypeStruct((B_pad, NO_pad), jnp.float32),
        grid_spec=pltpu.PrefetchScalarGridSpec(
            num_scalar_prefetch=0,
            grid=grid,
            in_specs=[
                pl.BlockSpec((bm, H), lambda i: (i, 0), memory_space=vmem),
                pl.BlockSpec((H, NH_pad), lambda i: (0, 0), memory_space=vmem),
                pl.BlockSpec((1, NH_pad), lambda i: (0, 0), memory_space=vmem),
                pl.BlockSpec((NH_pad, NO_pad), lambda i: (0, 0),
                             memory_space=vmem),
                pl.BlockSpec((1, NO_pad), lambda i: (0, 0), memory_space=vmem),
            ],
            out_specs=pl.BlockSpec((bm, NO_pad), lambda i: (i, 0),
                                   memory_space=vmem),
        ),
        compiler_params=pltpu.CompilerParams(
            dimension_semantics=("parallel",),
            vmem_limit_bytes=64 << 20,
        ),
    )(x_p, w1p, b1p, w2bd, b2p)

    # Split the single lane-dense output into the per-branch list (cheap
    # wrapper-side slices; the kernel itself does one unmasked store).
    return [y[:B, i * O:(i + 1) * O] for i in range(N)]


def _reference(x, w1, b1, w2, b2):
    h = jnp.maximum(jnp.einsum("bh,nhd->nbd", x, w1) + b1, 0.0)
    return jnp.einsum("nbd,ndo->nbo", h, w2) + b2


if __name__ == "__main__":
    # Small shapes: 4 branches, batch=8, features=32, branch hidden=64, out=4
    N, B, H, HID, O = 4, 8, 32, 64, 4

    key = jax.random.PRNGKey(0)
    k_x, k_w1, k_b1, k_w2, k_b2 = jax.random.split(key, 5)

    x = jax.random.normal(k_x, (B, H), dtype=jnp.float32)
    w1 = jax.random.normal(k_w1, (N, H, HID), dtype=jnp.float32) * 0.1
    b1 = jax.random.normal(k_b1, (N, 1, HID), dtype=jnp.float32) * 0.1
    w2 = jax.random.normal(k_w2, (N, HID, O), dtype=jnp.float32) * 0.1
    b2 = jax.random.normal(k_b2, (N, 1, O), dtype=jnp.float32) * 0.1

    # Pack once (amortized at init); f32 compute here for exactness.
    packed = pack_branching_params(w1, b1, w2, b2, compute_dtype=jnp.float32)

    outs = branching_forward(x, packed)
    outs = [jax.block_until_ready(o) for o in outs]

    ref = _reference(x, w1, b1, w2, b2)
    for i, o in enumerate(outs):
        assert o.shape == (B, O), o.shape
        assert jnp.allclose(o, ref[i], atol=1e-4, rtol=1e-4), f"branch {i} mismatch"

    print("KERNEL_OK")
</pallas_src>

<mosaic_0001>
module attributes {stable_mosaic.version = 11 : i64} {
  func.func @_branching_kernel(%arg0: i32, %arg1: memref<8x32xf32, #tpu.memory_space<vmem>>, %arg2: memref<32x256xf32, #tpu.memory_space<vmem>>, %arg3: memref<1x256xf32, #tpu.memory_space<vmem>>, %arg4: memref<256x128xf32, #tpu.memory_space<vmem>>, %arg5: memref<1x128xf32, #tpu.memory_space<vmem>>, %arg6: memref<8x128xf32, #tpu.memory_space<vmem>>) attributes {dimension_semantics = [#tpu.dimension_semantics<parallel>], iteration_bounds = array<i64: 1>, scalar_prefetch = 0 : i64, scratch_operands = 0 : i64, tpu.core_type = #tpu.core_type<tc>, window_params = [{transform_indices = @transform_0, window_bounds = array<i64: 8, 32>}, {pipeline_mode = #tpu.pipeline_mode<synchronous>, transform_indices = @transform_1, window_bounds = array<i64: 32, 256>}, {pipeline_mode = #tpu.pipeline_mode<synchronous>, transform_indices = @transform_2, window_bounds = array<i64: 1, 256>}, {pipeline_mode = #tpu.pipeline_mode<synchronous>, transform_indices = @transform_3, window_bounds = array<i64: 256, 128>}, {pipeline_mode = #tpu.pipeline_mode<synchronous>, transform_indices = @transform_4, window_bounds = array<i64: 1, 128>}, {transform_indices = @transform_5, window_bounds = array<i64: 8, 128>}]} {
    %c0 = arith.constant 0 : index
    %c0_0 = arith.constant 0 : index
    %0 = vector.load %arg1[%c0, %c0_0] : memref<8x32xf32, #tpu.memory_space<vmem>>, vector<8x32xf32>
    %c0_1 = arith.constant 0 : index
    %c0_2 = arith.constant 0 : index
    %1 = vector.load %arg2[%c0_1, %c0_2] : memref<32x256xf32, #tpu.memory_space<vmem>>, vector<32x256xf32>
    %cst = arith.constant dense<0.000000e+00> : vector<8x256xf32>
    %2 = tpu.matmul %0, %1, %cst {dimension_numbers = #tpu.dot_dimension_numbers<[1], [0], [0], [1], [0, 0, 1, 1], [], []>} : vector<8x32xf32>, vector<32x256xf32>, vector<8x256xf32> -> vector<8x256xf32>
    %c0_3 = arith.constant 0 : index
    %c0_4 = arith.constant 0 : index
    %3 = vector.load %arg3[%c0_3, %c0_4] : memref<1x256xf32, #tpu.memory_space<vmem>>, vector<1x256xf32>
    %4 = vector.broadcast %3 : vector<1x256xf32> to vector<8x256xf32>
    %5 = arith.addf %2, %4 : vector<8x256xf32>
    %cst_5 = arith.constant 0.000000e+00 : f32
    %6 = vector.broadcast %cst_5 : f32 to vector<8x256xf32>
    %7 = arith.maximumf %5, %6 : vector<8x256xf32>
    %c0_6 = arith.constant 0 : index
    %c0_7 = arith.constant 0 : index
    %8 = vector.load %arg4[%c0_6, %c0_7] : memref<256x128xf32, #tpu.memory_space<vmem>>, vector<256x128xf32>
    %cst_8 = arith.constant dense<0.000000e+00> : vector<8x128xf32>
    %9 = tpu.matmul %7, %8, %cst_8 {dimension_numbers = #tpu.dot_dimension_numbers<[1], [0], [0], [1], [0, 0, 1, 1], [], []>} : vector<8x256xf32>, vector<256x128xf32>, vector<8x128xf32> -> vector<8x128xf32>
    %c0_9 = arith.constant 0 : index
    %c0_10 = arith.constant 0 : index
    %10 = vector.load %arg5[%c0_9, %c0_10] : memref<1x128xf32, #tpu.memory_space<vmem>>, vector<1x128xf32>
    %11 = vector.broadcast %10 : vector<1x128xf32> to vector<8x128xf32>
    %12 = arith.addf %9, %11 : vector<8x128xf32>
    %c0_11 = arith.constant 0 : index
    %c0_12 = arith.constant 0 : index
    %13 = vector.load %arg6[%c0_11, %c0_12] : memref<8x128xf32, #tpu.memory_space<vmem>>, vector<8x128xf32>
    tpu.vector_store %arg6[%c0_11, %c0_12], %12 {strides = array<i32>} : memref<8x128xf32, #tpu.memory_space<vmem>>, vector<8x128xf32>,
    return
  }
  func.func @transform_0(%arg0: i32) -> (i32, i32) {
    %c0_i32 = arith.constant 0 : i32
    %c0_i32_0 = arith.constant 0 : i32
    return %arg0, %c0_i32 : i32, i32
  }
  func.func @transform_1(%arg0: i32) -> (i32, i32) {
    %c0_i32 = arith.constant 0 : i32
    %c0_i32_0 = arith.constant 0 : i32
    %c0_i32_1 = arith.constant 0 : i32
    return %c0_i32, %c0_i32_0 : i32, i32
  }
  func.func @transform_2(%arg0: i32) -> (i32, i32) {
    %c0_i32 = arith.constant 0 : i32
    %c0_i32_0 = arith.constant 0 : i32
    %c0_i32_1 = arith.constant 0 : i32
    return %c0_i32, %c0_i32_0 : i32, i32
  }
  func.func @transform_3(%arg0: i32) -> (i32, i32) {
    %c0_i32 = arith.constant 0 : i32
    %c0_i32_0 = arith.constant 0 : i32
    %c0_i32_1 = arith.constant 0 : i32
    return %c0_i32, %c0_i32_0 : i32, i32
  }
  func.func @transform_4(%arg0: i32) -> (i32, i32) {
    %c0_i32 = arith.constant 0 : i32
    %c0_i32_0 = arith.constant 0 : i32
    %c0_i32_1 = arith.constant 0 : i32
    return %c0_i32, %c0_i32_0 : i32, i32
  }
  func.func @transform_5(%arg0: i32) -> (i32, i32) {
    %c0_i32 = arith.constant 0 : i32
    %c0_i32_0 = arith.constant 0 : i32
    return %arg0, %c0_i32 : i32, i32
  }
}

</mosaic_0001>

<llo_original>
// kernel: tpu_custom_call.1
$region0: #{tpu_custom_call.1}
  #allocation0 [shape = 'u32[]', space=smem, size = 0x4, offset = 0x4, fixed_abs, tag = 'smem constant byte address 0x4 - core index']
  #allocation1 [shape = 'u32[144,128]{1,0:T(1,128)}', space=vmem, size = 0x12000, scoped, tag = 'internal scratch']
  %s0 = inlined_call_operand.hbm [shape: f32[8,32], index: 0, kind: input, shape index: {}]
  %s1 = inlined_call_operand.hbm [shape: f32[32,256], index: 1, kind: input, shape index: {}]
  %s2 = inlined_call_operand.hbm [shape: f32[1,256], index: 2, kind: input, shape index: {}]
  %s3 = inlined_call_operand.hbm [shape: f32[256,128], index: 3, kind: input, shape index: {}]
  %s4 = inlined_call_operand.hbm [shape: f32[1,128], index: 4, kind: input, shape index: {}]
  %s5 = inlined_call_operand.hbm [shape: f32[8,128], index: 5, kind: output, shape index: {}]
  %s6 = sld [smem:[#allocation0]]
  $region50: #{tpu_custom_call.1} parent=0
    _
  %s8 = ssub.s32 1, %s6
  %s9 = scalar_select 0, %s8, %s6
  $region1: #{tpu_custom_call.1} parent=0
    #allocation2 [shape = 'u8[4096]{0}', space=vmem, size = 0x1000, scoped, tag = 'input window, operand 0, single buffered']
    #allocation3 [shape = 's32[1]{0}', space=sflag, size = 0x4, scoped, tag = 'scoped memory for tpu_custom_call.1']
    #allocation4 [shape = 's32[1]{0}', space=sflag, size = 0x4, scoped, tag = 'scoped memory for tpu_custom_call.1']
    #allocation5 [shape = 'u8[32768]{0}', space=vmem, size = 0x8000, scoped, tag = 'input window, operand 1, single buffered']
    #allocation6 [shape = 's32[1]{0}', space=sflag, size = 0x4, scoped, tag = 'scoped memory for tpu_custom_call.1']
    #allocation7 [shape = 'u8[1024]{0}', space=vmem, size = 0x400, scoped, tag = 'input window, operand 2, single buffered']
    #allocation8 [shape = 'u8[131072]{0}', space=vmem, size = 0x20000, scoped, tag = 'input window, operand 3, single buffered']
    #allocation9 [shape = 's32[1]{0}', space=sflag, size = 0x4, scoped, tag = 'scoped memory for tpu_custom_call.1']
    #allocation10 [shape = 'u8[512]{0}', space=vmem, size = 0x400, scoped, tag = 'input window, operand 4, single buffered']
    #allocation11 [shape = 'u8[4096]{0}', space=vmem, size = 0x1000, scoped, tag = 'output window, operand 0, single buffered']
    %10 = vsyncpa [#allocation3], 0
    %11 = vsyncpa [#allocation6], 0
    %12 = vsyncpa [#allocation9], 0
    %13 = vsyncpa [#allocation4], 0
    // Predicated region
    $region2: #{tpu_custom_call.1} parent=1 // pred_check
      _
    $region3: #{tpu_custom_call.1} parent=1 // pred_check_branch
      %15 = sbr.rel (0) target = $region5
    $region4: #{tpu_custom_call.1} parent=1 // pred_region
      %s17 = ssub.s32 128, 128
      %18 = vsyncadd [#allocation3], %s17
      %s20 = sshll.u32 [#allocation2], 4
      %s21 = int_to_ptr.vmem [resolvable:$true] %s20
      %23 = dma.hbm_to_vmem [thread:$0]  %s0, 128, %s21, [#allocation3]
    $region5: #{tpu_custom_call.1} parent=1 // pred_fallthru
      _
    // Predicated region
    $region6: #{tpu_custom_call.1} parent=1 // pred_check
      _
    $region7: #{tpu_custom_call.1} parent=1 // pred_check_branch
      %25 = sbr.rel (0) target = $region9
    $region8: #{tpu_custom_call.1} parent=1 // pred_region
      %s27 = ssub.s32 1024, 1024
      %28 = vsyncadd [#allocation6], %s27
      %s29 = sshll.u32 [#allocation5], 4
      %s30 = int_to_ptr.vmem [resolvable:$true] %s29
      %35 = dma.hbm_to_vmem [thread:$0]  %s1, 1024, %s30, [#allocation6], 256, 256, 16
    $region9: #{tpu_custom_call.1} parent=1 // pred_fallthru
      _
    // Predicated region
    $region10: #{tpu_custom_call.1} parent=1 // pred_check
      _
    $region11: #{tpu_custom_call.1} parent=1 // pred_check_branch
      %37 = sbr.rel (0) target = $region13
    $region12: #{tpu_custom_call.1} parent=1 // pred_region
      %s39 = ssub.s32 32, 32
      %40 = vsyncadd [#allocation6], %s39
      %s42 = sshll.u32 [#allocation7], 4
      %s43 = int_to_ptr.vmem [resolvable:$true] %s42
      %45 = dma.hbm_to_vmem [thread:$0]  %s2, 32, %s43, [#allocation6]
    $region13: #{tpu_custom_call.1} parent=1 // pred_fallthru
      _
    // Predicated region
    $region14: #{tpu_custom_call.1} parent=1 // pred_check
      _
    $region15: #{tpu_custom_call.1} parent=1 // pred_check_branch
      %47 = sbr.rel (0) target = $region17
    $region16: #{tpu_custom_call.1} parent=1 // pred_region
      %s49 = ssub.s32 4096, 4096
      %50 = vsyncadd [#allocation9], %s49
      %s51 = sshll.u32 [#allocation8], 4
      %s52 = int_to_ptr.vmem [resolvable:$true] %s51
      %57 = dma.hbm_to_vmem [thread:$0]  %s3, 4096, %s52, [#allocation9], 128, 128, 8
    $region17: #{tpu_custom_call.1} parent=1 // pred_fallthru
      _
    // Predicated region
    $region18: #{tpu_custom_call.1} parent=1 // pred_check
      _
    $region19: #{tpu_custom_call.1} parent=1 // pred_check_branch
      %59 = sbr.rel (0) target = $region21
    $region20: #{tpu_custom_call.1} parent=1 // pred_region
      %s61 = ssub.s32 16, 16
      %62 = vsyncadd [#allocation9], %s61
      %s64 = sshll.u32 [#allocation10], 4
      %s65 = int_to_ptr.vmem [resolvable:$true] %s64
      %67 = dma.hbm_to_vmem [thread:$0]  %s4, 16, %s65, [#allocation9]
    $region21: #{tpu_custom_call.1} parent=1 // pred_fallthru
      _
    // Predicated region
    $region22: #{tpu_custom_call.1} parent=1 // pred_check
      _
    $region23: #{tpu_custom_call.1} parent=1 // pred_check_branch
      %69 = sbr.rel (0) target = $region25
    $region24: #{tpu_custom_call.1} parent=1 // pred_region
      %70 = dma.done [#allocation3], 128
    $region25: #{tpu_custom_call.1} parent=1 // pred_fallthru
      _
    // Predicated region
    $region26: #{tpu_custom_call.1} parent=1 // pred_check
      _
    $region27: #{tpu_custom_call.1} parent=1 // pred_check_branch
      %72 = sbr.rel (0) target = $region29
    $region28: #{tpu_custom_call.1} parent=1 // pred_region
      %73 = dma.done [#allocation6], 1024
    $region29: #{tpu_custom_call.1} parent=1 // pred_fallthru
      _
    // Predicated region
    $region30: #{tpu_custom_call.1} parent=1 // pred_check
      _
    $region31: #{tpu_custom_call.1} parent=1 // pred_check_branch
      %75 = sbr.rel (0) target = $region33
    $region32: #{tpu_custom_call.1} parent=1 // pred_region
      %76 = dma.done [#allocation6], 32
    $region33: #{tpu_custom_call.1} parent=1 // pred_fallthru
      _
    // Predicated region
    $region34: #{tpu_custom_call.1} parent=1 // pred_check
      _
    $region35: #{tpu_custom_call.1} parent=1 // pred_check_branch
      %78 = sbr.rel (0) target = $region37
    $region36: #{tpu_custom_call.1} parent=1 // pred_region
      %79 = dma.done [#allocation9], 4096
    $region37: #{tpu_custom_call.1} parent=1 // pred_fallthru
      _
    // Predicated region
    $region38: #{tpu_custom_call.1} parent=1 // pred_check
      _
    $region39: #{tpu_custom_call.1} parent=1 // pred_check_branch
      %81 = sbr.rel (0) target = $region41
    $region40: #{tpu_custom_call.1} parent=1 // pred_region
      %82 = dma.done [#allocation9], 16
    $region41: #{tpu_custom_call.1} parent=1 // pred_fallthru
      _
    %v83 = vld [vmem:[#allocation2] sm:$0xff]
    %v84 = vld [vmem:[#allocation5] sm:$0xff]
    %v85 = vld [vmem:[#allocation5 + $0x8] sm:$0xff]
    %v86 = vld [vmem:[#allocation5 + $0x10] sm:$0xff]
    %v87 = vld [vmem:[#allocation5 + $0x18] sm:$0xff]
    %v88 = vld [vmem:[#allocation5 + $0x20] sm:$0xff]
    %v89 = vld [vmem:[#allocation5 + $0x28] sm:$0xff]
    %v90 = vld [vmem:[#allocation5 + $0x30] sm:$0xff]
    %v91 = vld [vmem:[#allocation5 + $0x38] sm:$0xff]
    %v92 = vld [vmem:[#allocation7] sm:$0x3]
    %v94 = vlaneseq
    %v95 = vshrl.u32 %v94, 7
    %v96 = vsub.s32 0, %v95
    %v97 = vrot.slane %v92, %v96
    %v98 = vlaneseq
    %v99 = vshrl.u32 %v98, 7
    %v100 = vsub.s32 1, %v99
    %v101 = vrot.slane %v92, %v100
    %vm104 = vcmask 261120
    %v106 = vsel %vm104, %v83, 0
    %108 = vmatprep.subr.mxu0 %v85
    %109 = vmatpush1.msra.mxu0 %v84
    %110 = vmatprep.subr.mxu0 %v87
    %111 = vmatpush1.msra.mxu0 %v86
    %112 = vmatprep.subr.mxu0 %v89
    %113 = vmatpush1.msra.mxu0 %v88
    %114 = vmatprep.subr.mxu0 %v91
    %115 = vmatpush1.msra.mxu0 %v90
    %116 = vmatprep.subr.mxu0 0.0
    %117 = vmatpush1.msra.mxu0 0.0
    %118 = vmatprep.subr.mxu0 0.0
    %119 = vmatpush1.msra.mxu0 0.0
    %120 = vmatprep.subr.mxu0 0.0
    %121 = vmatpush1.msra.mxu0 0.0
    %122 = vmatprep.subr.mxu0 0.0
    %123 = vmatpush1.msra.mxu0 0.0
    %124 = vmatprep.subr.mxu0 0.0
    %125 = vmatpush1.msra.mxu0 0.0
    %126 = vmatprep.subr.mxu0 0.0
    %127 = vmatpush1.msra.mxu0 0.0
    %128 = vmatprep.subr.mxu0 0.0
    %129 = vmatpush1.msra.mxu0 0.0
    %130 = vmatprep.subr.mxu0 0.0
    %131 = vmatpush1.msra.mxu0 0.0
    %132 = vmatprep.subr.mxu0 0.0
    %133 = vmatpush1.msra.mxu0 0.0
    %134 = vmatprep.subr.mxu0 0.0
    %135 = vmatpush1.msra.mxu0 0.0
    %136 = vmatprep.subr.mxu0 0.0
    %137 = vmatpush1.msra.mxu0 0.0
    %138 = vmatprep.subr.mxu0 0.0
    %139 = vmatpush1.msra.mxu0 0.0
    %140 = vmatprep.subr.mxu0 0.0
    %141 = vmatpush1.msra.mxu0 0.0
    %142 = vmatprep.subr.mxu0 0.0
    %143 = vmatpush1.msra.mxu0 0.0
    %144 = vmatprep.subr.mxu0 0.0
    %145 = vmatpush1.msra.mxu0 0.0
    %146 = vmatprep.subr.mxu0 0.0
    %147 = vmatpush1.msra.mxu0 0.0
    %148 = vmatprep.subr.mxu0 0.0
    %149 = vmatpush1.msra.mxu0 0.0
    %150 = vmatprep.subr.mxu0 0.0
    %151 = vmatpush1.msra.mxu0 0.0
    %152 = vmatprep.subr.mxu0 0.0
    %153 = vmatpush1.msra.mxu0 0.0
    %154 = vmatprep.subr.mxu0 0.0
    %155 = vmatpush1.msra.mxu0 0.0
    %156 = vmatprep.subr.mxu0 0.0
    %157 = vmatpush1.msra.mxu0 0.0
    %158 = vmatprep.subr.mxu0 0.0
    %159 = vmatpush1.msra.mxu0 0.0
    %160 = vmatprep.subr.mxu0 0.0
    %161 = vmatpush1.msra.mxu0 0.0
    %162 = vmatprep.subr.mxu0 0.0
    %163 = vmatpush1.msra.mxu0 0.0
    %164 = vmatprep.subr.mxu0 0.0
    %165 = vmatpush1.msra.mxu0 0.0
    %166 = vmatprep.subr.mxu0 0.0
    %167 = vmatpush1.msra.mxu0 0.0
    %168 = vmatprep.subr.mxu0 0.0
    %169 = vmatpush1.msra.mxu0 0.0
    %170 = vmatprep.subr.mxu0 0.0
    %171 = vmatpush1.msra.mxu0 0.0
    %172 = vmatprep.mubr.f32.mxu0 0.0
    %173 = vmatmul.mubr.f32.gmra.mrb[0].mxu0 %v106
    %v174 = vpop.f32.mrb[0].mxu0
    %v175 = vadd.f32 %v97, %v174
    %v176 = vpop.f32.mrb[0].mxu0
    %v177 = vadd.f32 %v101, %v176
    %178 = vdwg.mxu0
    %v179 = vmax.f32 %v175, 0.0
    %v180 = vmax.f32 %v177, 0.0
    %v181 = vld [vmem:[#allocation8] sm:$0xff]
    %v182 = vld [vmem:[#allocation8 + $0x8] sm:$0xff]
    %v183 = vld [vmem:[#allocation8 + $0x10] sm:$0xff]
    %v184 = vld [vmem:[#allocation8 + $0x18] sm:$0xff]
    %v185 = vld [vmem:[#allocation8 + $0x20] sm:$0xff]
    %v186 = vld [vmem:[#allocation8 + $0x28] sm:$0xff]
    %v187 = vld [vmem:[#allocation8 + $0x30] sm:$0xff]
    %v188 = vld [vmem:[#allocation8 + $0x38] sm:$0xff]
    %v189 = vld [vmem:[#allocation8 + $0x40] sm:$0xff]
    %v190 = vld [vmem:[#allocation8 + $0x48] sm:$0xff]
    %v191 = vld [vmem:[#allocation8 + $0x50] sm:$0xff]
    %v192 = vld [vmem:[#allocation8 + $0x58] sm:$0xff]
    %v193 = vld [vmem:[#allocation8 + $0x60] sm:$0xff]
    %v194 = vld [vmem:[#allocation8 + $0x68] sm:$0xff]
    %v195 = vld [vmem:[#allocation8 + $0x70] sm:$0xff]
    %v196 = vld [vmem:[#allocation8 + $0x78] sm:$0xff]
    %v197 = vld [vmem:[#allocation8 + $0x80] sm:$0xff]
    %v198 = vld [vmem:[#allocation8 + $0x88] sm:$0xff]
    %v199 = vld [vmem:[#allocation8 + $0x90] sm:$0xff]
    %v200 = vld [vmem:[#allocation8 + $0x98] sm:$0xff]
    %v201 = vld [vmem:[#allocation8 + $0xa0] sm:$0xff]
    %v202 = vld [vmem:[#allocation8 + $0xa8] sm:$0xff]
    %v203 = vld [vmem:[#allocation8 + $0xb0] sm:$0xff]
    %v204 = vld [vmem:[#allocation8 + $0xb8] sm:$0xff]
    %v205 = vld [vmem:[#allocation8 + $0xc0] sm:$0xff]
    %v206 = vld [vmem:[#allocation8 + $0xc8] sm:$0xff]
    %v207 = vld [vmem:[#allocation8 + $0xd0] sm:$0xff]
    %v208 = vld [vmem:[#allocation8 + $0xd8] sm:$0xff]
    %v209 = vld [vmem:[#allocation8 + $0xe0] sm:$0xff]
    %v210 = vld [vmem:[#allocation8 + $0xe8] sm:$0xff]
    %v211 = vld [vmem:[#allocation8 + $0xf0] sm:$0xff]
    %v212 = vld [vmem:[#allocation8 + $0xf8] sm:$0xff]
    %v213 = vld [vmem:[#allocation10] sm:$0x1]
    %v215 = vlaneseq
    %v216 = vshrl.u32 %v215, 7
    %v217 = vsub.s32 0, %v216
    %v218 = vrot.slane %v213, %v217
    %220 = vmatprep.subr.mxu0 0.0
    %221 = vmatpush1.msra.mxu0 %v181
    %222 = vmatprep.subr.mxu0 0.0
    %223 = vmatpush1.msra.mxu0 %v182
    %224 = vmatprep.subr.mxu0 0.0
    %225 = vmatpush1.msra.mxu0 %v183
    %226 = vmatprep.subr.mxu0 0.0
    %227 = vmatpush1.msra.mxu0 %v184
    %228 = vmatprep.subr.mxu0 0.0
    %229 = vmatpush1.msra.mxu0 %v185
    %230 = vmatprep.subr.mxu0 0.0
    %231 = vmatpush1.msra.mxu0 %v186
    %232 = vmatprep.subr.mxu0 0.0
    %233 = vmatpush1.msra.mxu0 %v187
    %234 = vmatprep.subr.mxu0 0.0
    %235 = vmatpush1.msra.mxu0 %v188
    %236 = vmatprep.subr.mxu0 0.0
    %237 = vmatpush1.msra.mxu0 %v189
    %238 = vmatprep.subr.mxu0 0.0
    %239 = vmatpush1.msra.mxu0 %v190
    %240 = vmatprep.subr.mxu0 0.0
    %241 = vmatpush1.msra.mxu0 %v191
    %242 = vmatprep.subr.mxu0 0.0
    %243 = vmatpush1.msra.mxu0 %v192
    %244 = vmatprep.subr.mxu0 0.0
    %245 = vmatpush1.msra.mxu0 %v193
    %246 = vmatprep.subr.mxu0 0.0
    %247 = vmatpush1.msra.mxu0 %v194
    %248 = vmatprep.subr.mxu0 0.0
    %249 = vmatpush1.msra.mxu0 %v195
    %250 = vmatprep.subr.mxu0 0.0
    %251 = vmatpush1.msra.mxu0 %v196
    %252 = vmatprep.subr.mxu0 0.0
    %253 = vmatpush1.msra.mxu0 %v197
    %254 = vmatprep.subr.mxu0 0.0
    %255 = vmatpush1.msra.mxu0 %v198
    %256 = vmatprep.subr.mxu0 0.0
    %257 = vmatpush1.msra.mxu0 %v199
    %258 = vmatprep.subr.mxu0 0.0
    %259 = vmatpush1.msra.mxu0 %v200
    %260 = vmatprep.subr.mxu0 0.0
    %261 = vmatpush1.msra.mxu0 %v201
    %262 = vmatprep.subr.mxu0 0.0
    %263 = vmatpush1.msra.mxu0 %v202
    %264 = vmatprep.subr.mxu0 0.0
    %265 = vmatpush1.msra.mxu0 %v203
    %266 = vmatprep.subr.mxu0 0.0
    %267 = vmatpush1.msra.mxu0 %v204
    %268 = vmatprep.subr.mxu0 0.0
    %269 = vmatpush1.msra.mxu0 %v205
    %270 = vmatprep.subr.mxu0 0.0
    %271 = vmatpush1.msra.mxu0 %v206
    %272 = vmatprep.subr.mxu0 0.0
    %273 = vmatpush1.msra.mxu0 %v207
    %274 = vmatprep.subr.mxu0 0.0
    %275 = vmatpush1.msra.mxu0 %v208
    %276 = vmatprep.subr.mxu0 0.0
    %277 = vmatpush1.msra.mxu0 %v209
    %278 = vmatprep.subr.mxu0 0.0
    %279 = vmatpush1.msra.mxu0 %v210
    %280 = vmatprep.subr.mxu0 0.0
    %281 = vmatpush1.msra.mxu0 %v211
    %282 = vmatprep.subr.mxu0 0.0
    %283 = vmatpush1.msra.mxu0 %v212
    %284 = vmatprep.mubr.f32.mxu0 %v180
    %285 = vmatmul.mubr.f32.gmra.mrb[0].mxu0 %v179
    %v286 = vpop.f32.mrb[0].mxu0
    %v287 = vadd.f32 %v218, %v286
    %v288 = vpop.f32.mrb[0].mxu0
    %289 = vdwg.mxu0
    %290 = vst [vmem:[#allocation11] sm:$0xff] %v287
    // Predicated region
    $region42: #{tpu_custom_call.1} parent=1 // pred_check
      _
    $region43: #{tpu_custom_call.1} parent=1 // pred_check_branch
      %292 = sbr.rel (0) target = $region45
    $region44: #{tpu_custom_call.1} parent=1 // pred_region
      %s294 = ssub.s32 128, 128
      %295 = vsyncadd [#allocation4], %s294
      %s297 = sshll.u32 [#allocation11], 4
      %s298 = int_to_ptr.vmem [resolvable:$true] %s297
      %300 = dma.vmem_to_hbm [thread:$0]  %s298, 128, %s5, [#allocation4]
    $region45: #{tpu_custom_call.1} parent=1 // pred_fallthru
      _
    // Predicated region
    $region46: #{tpu_custom_call.1} parent=1 // pred_check
      _
    $region47: #{tpu_custom_call.1} parent=1 // pred_check_branch
      %302 = sbr.rel (0) target = $region49
    $region48: #{tpu_custom_call.1} parent=1 // pred_region
      %303 = dma.done [#allocation4], 128
    $region49: #{tpu_custom_call.1} parent=1 // pred_fallthru
      _
    %304 = vsyncpa [#allocation3], 1
    %305 = vsyncpa [#allocation6], 1
    %306 = vsyncpa [#allocation9], 1
    %307 = vsyncpa [#allocation4], 1

</llo_original>
